<compile_context>
chip_gen: v7x
topology: tpu7x:2x2x1
jax: 0.10.0
libtpu: 0.0.40
codegen_flags: <defaults>
</compile_context>

<pallas_src>
import functools

import jax
import jax.numpy as jnp
from jax import lax
from jax.experimental import pallas as pl
from jax.experimental.pallas import tpu as pltpu


def _round_up(v, m):
    return ((v + m - 1) // m) * m


def _rpl_kernel(*refs, add_bias, single_k, ragged_k, k_dim, tk):
    """One (i, j, k) grid step of Y[i, j] += X[i, k] @ W[j, k].T  (+ bias)."""
    if single_k:
        if add_bias:
            x_ref, w_ref, b_ref, o_ref = refs
        else:
            x_ref, w_ref, o_ref = refs
            b_ref = None
        acc_ref = None
    else:
        if add_bias:
            x_ref, w_ref, b_ref, o_ref, acc_ref = refs
        else:
            x_ref, w_ref, o_ref, acc_ref = refs
            b_ref = None

    k = pl.program_id(2)

    x = x_ref[...]
    w = w_ref[...]

    if ragged_k:
        # Last K block reads past the array end (undefined data).  Zero both
        # operands beyond the valid K extent so garbage (possibly NaN) never
        # contaminates valid outputs.  Static flag: no cost when K divides tk.
        limit = jnp.minimum(k_dim - k * tk, tk)
        x = jnp.where(lax.broadcasted_iota(jnp.int32, x.shape, 1) < limit, x, 0)
        w = jnp.where(lax.broadcasted_iota(jnp.int32, w.shape, 1) < limit, w, 0)

    # X tile (tm, tk) contracted against W tile (tn, tk) on the shared minor K
    # axis — the MXU consumes the "transposed" operand natively.
    partial = lax.dot_general(
        x, w,
        dimension_numbers=(((1,), (1,)), ((), ())),
        preferred_element_type=jnp.float32)

    if single_k:
        acc = partial
        if add_bias:
            acc = acc + b_ref[...].astype(jnp.float32)  # (1, tn) broadcasts
        o_ref[...] = acc.astype(o_ref.dtype)
        return

    @pl.when(k == 0)
    def _():
        acc_ref[...] = partial          # direct write: no zero-fill + reload

    @pl.when(k > 0)
    def _():
        acc_ref[...] += partial

    @pl.when(k == pl.num_programs(2) - 1)
    def _():
        acc = acc_ref[...]
        if add_bias:
            acc = acc + b_ref[...].astype(jnp.float32)
        o_ref[...] = acc.astype(o_ref.dtype)


def row_parallel_linear(x, weight, bias=None, *, skip_bias_add=False,
                        tile_m=512, tile_n=512, tile_k=None):
    """Forward of RowParallelLinear.

    Args:
      x:      [seq, batch, hidden_in]
      weight: [hidden_out, hidden_in]   (PyTorch F.linear convention)
      bias:   [hidden_out] or None
      skip_bias_add: if True, do not add bias; return it as the second output.

    Returns:
      (output [seq, batch, hidden_out], output_bias or None)
    """
    seq, batch, k_dim = x.shape
    n_dim, k_w = weight.shape
    assert k_dim == k_w, "hidden dims must match"

    m_dim = seq * batch
    x2d = x.reshape(m_dim, k_dim)

    add_bias = (bias is not None) and (not skip_bias_add)

    # bf16 halves HBM traffic and VMEM per tile -> double the K tile.
    if tile_k is None:
        tile_k = 2048 if x.dtype == jnp.bfloat16 else 1024

    # Dims that fit inside one tile use the full dim (always a legal block
    # shape); larger dims use the preferred tile and Pallas masks the ragged
    # edge blocks (OOB output writes are dropped).
    tm = m_dim if m_dim <= tile_m else tile_m
    tn = n_dim if n_dim <= tile_n else tile_n
    tk = k_dim if k_dim <= tile_k else tile_k

    # v7x has 2 TensorCores sharded over the "parallel" grid axes: make sure
    # there are >= 2 parallel blocks.  Split the axis whose re-read cost (the
    # other operand is re-fetched once per extra block) is smaller; only
    # single-output-tile problems hit this, so the extra traffic is small.
    if pl.cdiv(m_dim, tm) * pl.cdiv(n_dim, tn) == 1:
        if m_dim <= n_dim and n_dim >= 256:
            tn = _round_up(pl.cdiv(n_dim, 2), 128)
        elif m_dim >= 16:
            tm = _round_up(pl.cdiv(m_dim, 2), 8)
        elif n_dim >= 256:
            tn = _round_up(pl.cdiv(n_dim, 2), 128)

    nk = pl.cdiv(k_dim, tk)
    single_k = (nk == 1)
    ragged_k = (k_dim % tk) != 0

    grid = (pl.cdiv(m_dim, tm), pl.cdiv(n_dim, tn), nk)

    in_specs = [
        pl.BlockSpec((tm, tk), lambda i, j, kk: (i, kk)),   # X   [M, K]
        pl.BlockSpec((tn, tk), lambda i, j, kk: (j, kk)),   # W   [N, K]
    ]
    operands = [x2d, weight]
    if add_bias:
        b2d = bias.reshape(1, n_dim)
        in_specs.append(pl.BlockSpec((1, tn), lambda i, j, kk: (0, j)))
        operands.append(b2d)

    scratch_shapes = [] if single_k else [pltpu.VMEM((tm, tn), jnp.float32)]

    kernel = functools.partial(
        _rpl_kernel, add_bias=add_bias, single_k=single_k,
        ragged_k=ragged_k, k_dim=k_dim, tk=tk)

    x_item = jnp.dtype(x.dtype).itemsize
    w_item = jnp.dtype(weight.dtype).itemsize
    b_item = jnp.dtype(bias.dtype).itemsize if add_bias else 0

    # Double-buffered tile working set; raise the scoped VMEM limit above the
    # v5e 16 MiB default with generous headroom, capped well under v7x's
    # 64 MiB/TC physical VMEM.
    need = 2 * (tm * tk * x_item + tn * tk * w_item + tm * tn * x_item)
    if add_bias:
        need += 2 * tn * b_item
    if not single_k:
        need += tm * tn * 4
    vmem_limit = int(min(max(2 * need, 32 << 20), 48 << 20))

    bytes_accessed = int(
        x2d.size * x_item + weight.size * w_item
        + m_dim * n_dim * x_item + (n_dim * b_item if add_bias else 0))

    # NOTE: f32 inputs may run at the MXU's default (reduced) internal
    # precision; both kernel and XLA reference use the same mode.
    out2d = pl.pallas_call(
        kernel,
        out_shape=jax.ShapeDtypeStruct((m_dim, n_dim), x.dtype),
        grid_spec=pltpu.PrefetchScalarGridSpec(
            num_scalar_prefetch=0,
            grid=grid,
            in_specs=in_specs,
            out_specs=pl.BlockSpec((tm, tn), lambda i, j, kk: (i, j)),
            scratch_shapes=scratch_shapes,
        ),
        compiler_params=pltpu.CompilerParams(
            dimension_semantics=("parallel", "parallel", "arbitrary"),
            vmem_limit_bytes=vmem_limit),
        cost_estimate=pl.CostEstimate(
            flops=int(2 * m_dim * n_dim * k_dim),
            transcendentals=0,
            bytes_accessed=bytes_accessed),
    )(*operands)

    output = out2d.reshape(seq, batch, n_dim)
    output_bias = bias if skip_bias_add else None
    return output, output_bias


def init_row_parallel_linear_params(key, input_size, output_size,
                                    dtype=jnp.float32):
    """Parameter init matching the module: xavier-normal weight, zero bias."""
    std = (2.0 / (input_size + output_size)) ** 0.5
    weight = (std * jax.random.normal(key, (output_size, input_size),
                                      dtype=jnp.float32)).astype(dtype)
    bias = jnp.zeros((output_size,), dtype=dtype)
    return weight, bias


if __name__ == "__main__":
    key = jax.random.PRNGKey(0)
    kx1, kw1, kx2, kw2 = jax.random.split(key, 4)

    # --- Small shapes consistent with forward(): [sequence, batch, hidden] ---
    seq, batch = 8, 2
    input_size, output_size = 32, 32
    x = jax.random.normal(kx1, (seq, batch, input_size), dtype=jnp.float32)
    weight, bias = init_row_parallel_linear_params(kw1, input_size, output_size)

    out, out_bias = row_parallel_linear(x, weight, bias, skip_bias_add=False)
    out = jax.block_until_ready(out)
    ref = jnp.einsum("sbk,nk->sbn", x, weight) + bias
    assert out.shape == (seq, batch, output_size)
    assert out_bias is None
    assert jnp.allclose(out, ref, atol=1e-5, rtol=1e-5)

    # skip_bias_add=True path (no bias operand is DMA'd in the kernel).
    out2, out_bias2 = row_parallel_linear(x, weight, bias, skip_bias_add=True)
    out2 = jax.block_until_ready(out2)
    ref2 = jnp.einsum("sbk,nk->sbn", x, weight)
    assert jnp.allclose(out2, ref2, atol=1e-5, rtol=1e-5)
    assert out_bias2 is bias

    # --- Ragged M/N/K tiling exercised with small override tiles (keeps the
    #     arrays tiny while covering edge-block masking and the in-kernel K
    #     mask on the final contraction block). ---
    seq_b, batch_b = 10, 8            # M = 80  -> 2 ragged blocks at tm=64
    in_b, out_b = 200, 160            # K = 200 -> ragged at tk=128; N = 160 ragged at tn=128
    xb = jax.random.normal(kx2, (seq_b, batch_b, in_b), dtype=jnp.float32)
    wb, bb = init_row_parallel_linear_params(kw2, in_b, out_b)

    outb, _ = row_parallel_linear(xb, wb, bb, skip_bias_add=False,
                                  tile_m=64, tile_n=128, tile_k=128)
    outb = jax.block_until_ready(outb)
    refb = jnp.einsum("sbk,nk->sbn", xb, wb) + bb
    assert outb.shape == (seq_b, batch_b, out_b)
    assert jnp.allclose(outb, refb, atol=1e-4, rtol=1e-4)

    print("KERNEL_OK")
</pallas_src>

<mosaic_0001>
module attributes {stable_mosaic.version = 11 : i64} {
  func.func @_rpl_kernel(%arg0: i32, %arg1: i32, %arg2: i32, %arg3: memref<8x32xf32, #tpu.memory_space<vmem>>, %arg4: memref<32x32xf32, #tpu.memory_space<vmem>>, %arg5: memref<1x32xf32, #tpu.memory_space<vmem>>, %arg6: memref<8x32xf32, #tpu.memory_space<vmem>>) attributes {dimension_semantics = [#tpu.dimension_semantics<parallel>, #tpu.dimension_semantics<parallel>, #tpu.dimension_semantics<arbitrary>], iteration_bounds = array<i64: 2, 1, 1>, scalar_prefetch = 0 : i64, scratch_operands = 0 : i64, tpu.core_type = #tpu.core_type<tc>, window_params = [{transform_indices = @transform_0, window_bounds = array<i64: 8, 32>}, {transform_indices = @transform_1, window_bounds = array<i64: 32, 32>}, {transform_indices = @transform_2, window_bounds = array<i64: 1, 32>}, {transform_indices = @transform_3, window_bounds = array<i64: 8, 32>}]} {
    %c0 = arith.constant 0 : index
    %c0_0 = arith.constant 0 : index
    %0 = vector.load %arg3[%c0, %c0_0] : memref<8x32xf32, #tpu.memory_space<vmem>>, vector<8x32xf32>
    %c0_1 = arith.constant 0 : index
    %c0_2 = arith.constant 0 : index
    %1 = vector.load %arg4[%c0_1, %c0_2] : memref<32x32xf32, #tpu.memory_space<vmem>>, vector<32x32xf32>
    %cst = arith.constant dense<0.000000e+00> : vector<8x32xf32>
    %2 = tpu.matmul %0, %1, %cst {dimension_numbers = #tpu.dot_dimension_numbers<[1], [1], [0], [0], [0, 0, 1, 0], [], []>} : vector<8x32xf32>, vector<32x32xf32>, vector<8x32xf32> -> vector<8x32xf32>
    %c0_3 = arith.constant 0 : index
    %c0_4 = arith.constant 0 : index
    %3 = vector.load %arg5[%c0_3, %c0_4] : memref<1x32xf32, #tpu.memory_space<vmem>>, vector<1x32xf32>
    %4 = vector.broadcast %3 : vector<1x32xf32> to vector<8x32xf32>
    %5 = arith.addf %2, %4 : vector<8x32xf32>
    %c0_5 = arith.constant 0 : index
    %c0_6 = arith.constant 0 : index
    %6 = vector.load %arg6[%c0_5, %c0_6] : memref<8x32xf32, #tpu.memory_space<vmem>>, vector<8x32xf32>
    tpu.vector_store %arg6[%c0_5, %c0_6], %5 {strides = array<i32>} : memref<8x32xf32, #tpu.memory_space<vmem>>, vector<8x32xf32>,
    return
  }
  func.func @transform_0(%arg0: i32, %arg1: i32, %arg2: i32) -> (i32, i32) {
    %c0_i32 = arith.constant 0 : i32
    return %arg0, %arg2 : i32, i32
  }
  func.func @transform_1(%arg0: i32, %arg1: i32, %arg2: i32) -> (i32, i32) {
    %c0_i32 = arith.constant 0 : i32
    return %arg1, %arg2 : i32, i32
  }
  func.func @transform_2(%arg0: i32, %arg1: i32, %arg2: i32) -> (i32, i32) {
    %c0_i32 = arith.constant 0 : i32
    %c0_i32_0 = arith.constant 0 : i32
    return %c0_i32, %arg1 : i32, i32
  }
  func.func @transform_3(%arg0: i32, %arg1: i32, %arg2: i32) -> (i32, i32) {
    %c0_i32 = arith.constant 0 : i32
    return %arg0, %arg1 : i32, i32
  }
}

</mosaic_0001>

<llo_original>
// kernel: tpu_custom_call.1
$region0: #{tpu_custom_call.1}
  #allocation0 [shape = 'u32[]', space=smem, size = 0x4, offset = 0x4, fixed_abs, tag = 'smem constant byte address 0x4 - core index']
  #allocation1 [shape = 'u32[144,128]{1,0:T(1,128)}', space=vmem, size = 0x12000, scoped, tag = 'internal scratch']
  %s0 = inlined_call_operand.hbm [shape: f32[16,32], index: 0, kind: input, shape index: {}]
  %s1 = inlined_call_operand.hbm [shape: f32[32,32], index: 1, kind: input, shape index: {}]
  %s2 = inlined_call_operand.vmem [shape: f32[1,32], index: 2, kind: input, shape index: {}]
  %s3 = inlined_call_operand.hbm [shape: f32[16,32], index: 3, kind: output, shape index: {}]
  %s4 = sld [smem:[#allocation0]]
  $region53: #{tpu_custom_call.1} parent=0
    _
  %s6 = ssub.s32 1, %s4
  %s7 = scalar_select 0, %s6, %s4
  $region1: #{tpu_custom_call.1} parent=0
    #allocation2 [shape = 'u8[8192]{0}', space=vmem, size = 0x2000, scoped, tag = 'input window, operand 0']
    #allocation3 [shape = 's32[2]{0}', space=sflag, size = 0x8, scoped, tag = 'scoped memory for tpu_custom_call.1']
    #allocation4 [shape = 's32[2]{0}', space=sflag, size = 0x8, scoped, tag = 'scoped memory for tpu_custom_call.1']
    #allocation5 [shape = 'u8[16384]{0}', space=vmem, size = 0x4000, scoped, tag = 'input window, operand 1, single buffered']
    #allocation6 [shape = 's32[1]{0}', space=sflag, size = 0x4, scoped, tag = 'scoped memory for tpu_custom_call.1']
    #allocation7 [shape = 'u8[8192]{0}', space=vmem, size = 0x2000, scoped, tag = 'output window, operand 0']
    %8 = vsyncpa [#allocation3], 0
    %s9 = scalar_lea.sflag [#allocation3], 1
    %10 = vsyncpa %s9, 0
    %11 = vsyncpa [#allocation6], 0
    %12 = vsyncpa [#allocation4], 0
    %s13 = scalar_lea.sflag [#allocation4], 1
    %14 = vsyncpa %s13, 0
    loop: start=0, step=1, limit=4
    $region2: #{tpu_custom_call.1} parent=1 // loop_pre_header
      _
    $region3: #{tpu_custom_call.1} parent=1 // loop_header
      %s16 = sphi 0, %s20
      %p17 = scmp.ge.s32.totalorder %s16, 4
      %s23 = sphi 0, %s42
      %s24 = sphi 0, %s38
      %s25 = sphi 0, %s34
      %s26 = sphi 0, %s23
      %s27 = sphi 0, %s24
      %s28 = sphi 0, %s25
      %s29 = sphi 0, %s26
      %s30 = sphi 0, %s27
      %s31 = sphi 0, %s28
      %s47 = sphi 0, %s49
      %s50 = sphi 0, %s47
      %s51 = sphi 0, %s50
      %s67 = sphi 0, %s51
      %s75 = sphi 0, %s77
      %s78 = sphi 0, %s75
      %s79 = sphi 0, %s78
      %s95 = sphi 0, %s79
      %s101 = sphi 0, %s103
      %s104 = sphi 0, %s101
      %s105 = sphi 0, %s104
      %s121 = sphi 0, %s105
      %s129 = sphi 0, %s131
      %s132 = sphi 0, %s129
      %s133 = sphi 0, %s132
      %s149 = sphi 0, %s133
    $region4: #{tpu_custom_call.1} parent=1 // loop_header_branch
      %19 = sbr.rel (%p17) target = $region8
    $region5: #{tpu_custom_call.1} parent=1 // loop_body
      %s21 = ssub.s32 %s16, 1
      %s22 = ssub.s32 %s16, 2
      %s32 = sadd.s32 1, %s25
      %p33 = scmp.ge.s32.totalorder %s32, 1
      %s34 = scalar_select %p33, 0, %s32
      %s35 = sadd.s32 1, %s24
      %s36 = scalar_select %p33, %s35, %s24
      %p37 = scmp.ge.s32.totalorder %s36, 1
      %s38 = scalar_select %p37, 0, %s36
      %s39 = sadd.s32 1, %s23
      %s40 = scalar_select %p37, %s39, %s23
      %p41 = scmp.ge.s32.totalorder %s40, 2
      %s42 = scalar_select %p41, 0, %s40
      %s43 = ssub.s32 %s23, %s42
      %s44 = ssub.s32 %s25, %s34
      %s45 = sor.u32 %s43, %s44
      %p46 = scmp.eq.s32.totalorder %s45, 0
      %s48 = sadd.s32 %s47, 1
      %s49 = scalar_select %p46, %s47, %s48
      %p52 = pneg %p46
      %p53 = scmp.eq.s32.totalorder %s16, 1
      %p54 = por %p52, %p53
      %p55 = scmp.ne.s32.totalorder %s47, %s50
      %p56 = scmp.eq.s32.totalorder %s16, 0
      %p57 = por %p55, %p56
      %p58 = scmp.ne.s32.totalorder %s47, %s50
      %p59 = scmp.eq.s32.totalorder %s21, 1
      %p60 = por %p58, %p59
      %p61 = scmp.ne.s32.totalorder %s50, %s51
      %p62 = scmp.eq.s32.totalorder %s21, 0
      %p63 = por %p61, %p62
      %p64 = scmp.ne.s32.totalorder %s50, %s51
      %p65 = scmp.eq.s32.totalorder %s22, 1
      %p66 = por %p64, %p65
      %p68 = scmp.ne.s32.totalorder %s51, %s67
      %p69 = scmp.eq.s32.totalorder %s22, 0
      %p70 = por %p68, %p69
      %s71 = ssub.s32 %s24, %s38
      %s72 = ssub.s32 %s25, %s34
      %s73 = sor.u32 %s71, %s72
      %p74 = scmp.eq.s32.totalorder %s73, 0
      %s76 = sadd.s32 %s75, 1
      %s77 = scalar_select %p74, %s75, %s76
      %p80 = pneg %p74
      %p81 = scmp.eq.s32.totalorder %s16, 1
      %p82 = por %p80, %p81
      %p83 = scmp.ne.s32.totalorder %s75, %s78
      %p84 = scmp.eq.s32.totalorder %s16, 0
      %p85 = por %p83, %p84
      %p86 = scmp.ne.s32.totalorder %s75, %s78
      %p87 = scmp.eq.s32.totalorder %s21, 1
      %p88 = por %p86, %p87
      %p89 = scmp.ne.s32.totalorder %s78, %s79
      %p90 = scmp.eq.s32.totalorder %s21, 0
      %p91 = por %p89, %p90
      %p92 = scmp.ne.s32.totalorder %s78, %s79
      %p93 = scmp.eq.s32.totalorder %s22, 1
      %p94 = por %p92, %p93
      %p96 = scmp.ne.s32.totalorder %s79, %s95
      %p97 = scmp.eq.s32.totalorder %s22, 0
      %p98 = por %p96, %p97
      %s99 = ssub.s32 %s24, %s38
      %p100 = scmp.eq.s32.totalorder %s99, 0
      %s102 = sadd.s32 %s101, 1
      %s103 = scalar_select %p100, %s101, %s102
      %p106 = pneg %p100
      %p107 = scmp.eq.s32.totalorder %s16, 1
      %p108 = por %p106, %p107
      %p109 = scmp.ne.s32.totalorder %s101, %s104
      %p110 = scmp.eq.s32.totalorder %s16, 0
      %p111 = por %p109, %p110
      %p112 = scmp.ne.s32.totalorder %s101, %s104
      %p113 = scmp.eq.s32.totalorder %s21, 1
      %p114 = por %p112, %p113
      %p115 = scmp.ne.s32.totalorder %s104, %s105
      %p116 = scmp.eq.s32.totalorder %s21, 0
      %p117 = por %p115, %p116
      %p118 = scmp.ne.s32.totalorder %s104, %s105
      %p119 = scmp.eq.s32.totalorder %s22, 1
      %p120 = por %p118, %p119
      %p122 = scmp.ne.s32.totalorder %s105, %s121
      %p123 = scmp.eq.s32.totalorder %s22, 0
      %p124 = por %p122, %p123
      %s125 = ssub.s32 %s23, %s42
      %s126 = ssub.s32 %s24, %s38
      %s127 = sor.u32 %s125, %s126
      %p128 = scmp.eq.s32.totalorder %s127, 0
      %s130 = sadd.s32 %s129, 1
      %s131 = scalar_select %p128, %s129, %s130
      %p134 = pneg %p128
      %p135 = scmp.eq.s32.totalorder %s16, 1
      %p136 = por %p134, %p135
      %p137 = scmp.ne.s32.totalorder %s129, %s132
      %p138 = scmp.eq.s32.totalorder %s16, 0
      %p139 = por %p137, %p138
      %p140 = scmp.ne.s32.totalorder %s129, %s132
      %p141 = scmp.eq.s32.totalorder %s21, 1
      %p142 = por %p140, %p141
      %p143 = scmp.ne.s32.totalorder %s132, %s133
      %p144 = scmp.eq.s32.totalorder %s21, 0
      %p145 = por %p143, %p144
      %p146 = scmp.ne.s32.totalorder %s132, %s133
      %p147 = scmp.eq.s32.totalorder %s22, 1
      %p148 = por %p146, %p147
      %p150 = scmp.ne.s32.totalorder %s133, %s149
      %p151 = scmp.eq.s32.totalorder %s22, 0
      %p152 = por %p150, %p151
      %p153 = scmp.le.s32.totalorder 1, %s16
      %p154 = scmp.lt.s32.totalorder %s16, 3
      %p155 = pnand %p153, %p154
      %p156 = pneg %p155
      // Predicated region
      $region9: #{tpu_custom_call.1} parent=5 // pred_check
        _
      $region10: #{tpu_custom_call.1} parent=5 // pred_check_branch
        %158 = sbr.rel (%p155) target = $region12
      $region11: #{tpu_custom_call.1} parent=5 // pred_region
        %s159 = ssub.s32 %s16, 1
        // Predicated region
        $region13: #{tpu_custom_call.1} parent=11 // pred_check
          %p160 = pneg %p91
        $region14: #{tpu_custom_call.1} parent=11 // pred_check_branch
          %162 = sbr.rel (%p160) target = $region16
        $region15: #{tpu_custom_call.1} parent=11 // pred_region
          %s163 = smul.u32 4, %s27
          %s165 = ssub.s32 512, 512
          %166 = vsyncadd [#allocation6], %s165
          %s167 = sadd.s32 %s28, %s163
          %s168 = smul.addr %s167, 128
          %s169 = scalar_lea.hbm %s1, %s168
          %s170 = sshll.u32 [#allocation5], 4
          %s171 = int_to_ptr.vmem [resolvable:$true] %s170
          %176 = dma.hbm_to_vmem [thread:$0]  %s169, 512, %s171, [#allocation6], 128, 128, 8
        $region16: #{tpu_custom_call.1} parent=11 // pred_fallthru
          _
        // Predicated region
        $region17: #{tpu_custom_call.1} parent=11 // pred_check
          %p177 = pneg %p117
        $region18: #{tpu_custom_call.1} parent=11 // pred_check_branch
          %179 = sbr.rel (%p177) target = $region20
        $region19: #{tpu_custom_call.1} parent=11 // pred_region
          %p180 = scmp.lt.s32.totalorder %s27, 0
          %s181 = scalar_select %p180, %s27, 0
          %s182 = scalar_lea.vmem %s2, %s181
        $region20: #{tpu_custom_call.1} parent=11 // pred_fallthru
          _
      $region12: #{tpu_custom_call.1} parent=5 // pred_fallthru
        _
      %p183 = scmp.lt.s32.totalorder %s16, 2
      // Predicated region
      $region21: #{tpu_custom_call.1} parent=5 // pred_check
        %p184 = pneg %p183
      $region22: #{tpu_custom_call.1} parent=5 // pred_check_branch
        %186 = sbr.rel (%p184) target = $region24
      $region23: #{tpu_custom_call.1} parent=5 // pred_region
        // Predicated region
        $region25: #{tpu_custom_call.1} parent=23 // pred_check
          %p187 = pneg %p57
        $region26: #{tpu_custom_call.1} parent=23 // pred_check_branch
          %189 = sbr.rel (%p187) target = $region28
        $region27: #{tpu_custom_call.1} parent=23 // pred_region
          %s190 = sand.u32 %s47, 1
          %s191 = scalar_lea.sflag [#allocation3], %s190
          %s192 = sand.u32 %s47, 1
          %s193 = smul.addr %s192, 8
          %s194 = scalar_lea.vmem [#allocation2], %s193
          %s196 = ssub.s32 128, 128
          %197 = vsyncadd %s191, %s196
          %s198 = sadd.s32 %s25, %s23
          %s199 = smul.addr %s198, 128
          %s200 = scalar_lea.hbm %s0, %s199
          %s202 = sshll.u32 %s194, 4
          %s203 = int_to_ptr.vmem [resolvable:$true] %s202
          %205 = dma.hbm_to_vmem [thread:$0]  %s200, 128, %s203, %s191
        $region28: #{tpu_custom_call.1} parent=23 // pred_fallthru
          _
      $region24: #{tpu_custom_call.1} parent=5 // pred_fallthru
        _
      %p206 = scmp.le.s32.totalorder 1, %s16
      %p207 = scmp.lt.s32.totalorder %s16, 3
      %p208 = pnand %p206, %p207
      %p209 = pneg %p208
      // Predicated region
      $region29: #{tpu_custom_call.1} parent=5 // pred_check
        _
      $region30: #{tpu_custom_call.1} parent=5 // pred_check_branch
        %211 = sbr.rel (%p208) target = $region32
      $region31: #{tpu_custom_call.1} parent=5 // pred_region
        %s212 = ssub.s32 %s16, 1
        %s213 = sand.u32 %s50, 1
        %s214 = scalar_lea.sflag [#allocation3], %s213
        %s215 = sand.u32 %s50, 1
        %s216 = smul.addr %s215, 8
        %s217 = scalar_lea.vmem [#allocation2], %s216
        // Predicated region
        $region33: #{tpu_custom_call.1} parent=31 // pred_check
          %p218 = pneg %p63
        $region34: #{tpu_custom_call.1} parent=31 // pred_check_branch
          %220 = sbr.rel (%p218) target = $region36
        $region35: #{tpu_custom_call.1} parent=31 // pred_region
          %221 = dma.done %s214, 128
        $region36: #{tpu_custom_call.1} parent=31 // pred_fallthru
          _
        // Predicated region
        $region37: #{tpu_custom_call.1} parent=31 // pred_check
          %p222 = pneg %p91
        $region38: #{tpu_custom_call.1} parent=31 // pred_check_branch
          %224 = sbr.rel (%p222) target = $region40
        $region39: #{tpu_custom_call.1} parent=31 // pred_region
          %225 = dma.done [#allocation6], 512
        $region40: #{tpu_custom_call.1} parent=31 // pred_fallthru
          _
        %s226 = sand.u32 %s50, 1
        %s227 = scalar_lea.sflag [#allocation3], %s226
        %s228 = sand.u32 %s50, 1
        %s229 = smul.addr %s228, 8
        %s230 = scalar_lea.vmem [#allocation2], %s229
        %p231 = pneg %p63
        %p232 = pneg %p60
        %p233 = pneg %p91
        %p234 = pneg %p88
        %p235 = scmp.lt.s32.totalorder %s27, 0
        %s236 = scalar_select %p235, %s27, 0
        %s237 = scalar_lea.vmem %s2, %s236
        %p238 = pneg %p117
        %p239 = pneg %p114
        %p240 = pneg %p145
        %p241 = pneg %p142
        %s242 = sand.u32 %s132, 1
        %s243 = scalar_lea.sflag [#allocation4], %s242
        %s244 = sand.u32 %s132, 1
        %s245 = smul.addr %s244, 8
        %s246 = scalar_lea.vmem [#allocation7], %s245
        %s247 = smul.u32 4, %s27
        %p248 = scmp.lt.s32.totalorder %s27, 0
        %s249 = scalar_select %p248, %s27, 0
        %s250 = scalar_lea.vmem %s2, %s249
        %v251 = vld [vmem:[%s217] sm:$0xff]
        %v252 = vld [vmem:[#allocation5] sm:$0xff]
        %v253 = vld [vmem:[#allocation5 + $0x8] sm:$0xff]
        %v254 = vld [vmem:[#allocation5 + $0x10] sm:$0xff]
        %v255 = vld [vmem:[#allocation5 + $0x18] sm:$0xff]
        %v256 = vld [vmem:[%s250] sm:$0x1]
        %v258 = vlaneseq
        %v259 = vshrl.u32 %v258, 7
        %v260 = vsub.s32 0, %v259
        %v261 = vrot.slane %v256, %v260
        %vm263 = vcmask 261120
        %v265 = vsel %vm263, %v251, 0
        %v268 = vsel %vm263, %v252, 0
        %v271 = vsel %vm263, %v253, 0
        %v274 = vsel %vm263, %v254, 0
        %v277 = vsel %vm263, %v255, 0
        %279 = vmatprep.subr.mxu0 0.0
        %280 = vmatpush1.xpose.msra.mxu0 %v268
        %281 = vmatprep.subr.mxu0 0.0
        %282 = vmatpush1.xpose.msra.mxu0 %v271
        %283 = vmatprep.subr.mxu0 0.0
        %284 = vmatpush1.xpose.msra.mxu0 %v274
        %285 = vmatprep.subr.mxu0 0.0
        %286 = vmatpush1.xpose.msra.mxu0 %v277
        %287 = vmatprep.subr.mxu0 0.0
        %288 = vmatpush1.xpose.msra.mxu0 0.0
        %289 = vmatprep.subr.mxu0 0.0
        %290 = vmatpush1.xpose.msra.mxu0 0.0
        %291 = vmatprep.subr.mxu0 0.0
        %292 = vmatpush1.xpose.msra.mxu0 0.0
        %293 = vmatprep.subr.mxu0 0.0
        %294 = vmatpush1.xpose.msra.mxu0 0.0
        %295 = vmatprep.subr.mxu0 0.0
        %296 = vmatpush1.xpose.msra.mxu0 0.0
        %297 = vmatprep.subr.mxu0 0.0
        %298 = vmatpush1.xpose.msra.mxu0 0.0
        %299 = vmatprep.subr.mxu0 0.0
        %300 = vmatpush1.xpose.msra.mxu0 0.0
        %301 = vmatprep.subr.mxu0 0.0
        %302 = vmatpush1.xpose.msra.mxu0 0.0
        %303 = vmatprep.subr.mxu0 0.0
        %304 = vmatpush1.xpose.msra.mxu0 0.0
        %305 = vmatprep.subr.mxu0 0.0
        %306 = vmatpush1.xpose.msra.mxu0 0.0
        %307 = vmatprep.subr.mxu0 0.0
        %308 = vmatpush1.xpose.msra.mxu0 0.0
        %309 = vmatprep.subr.mxu0 0.0
        %310 = vmatpush1.xpose.msra.mxu0 0.0
        %311 = vmatprep.subr.mxu0 0.0
        %312 = vmatpush1.xpose.msra.mxu0 0.0
        %313 = vmatprep.subr.mxu0 0.0
        %314 = vmatpush1.xpose.msra.mxu0 0.0
        %315 = vmatprep.subr.mxu0 0.0
        %316 = vmatpush1.xpose.msra.mxu0 0.0
        %317 = vmatprep.subr.mxu0 0.0
        %318 = vmatpush1.xpose.msra.mxu0 0.0
        %319 = vmatprep.subr.mxu0 0.0
        %320 = vmatpush1.xpose.msra.mxu0 0.0
        %321 = vmatprep.subr.mxu0 0.0
        %322 = vmatpush1.xpose.msra.mxu0 0.0
        %323 = vmatprep.subr.mxu0 0.0
        %324 = vmatpush1.xpose.msra.mxu0 0.0
        %325 = vmatprep.subr.mxu0 0.0
        %326 = vmatpush1.xpose.msra.mxu0 0.0
        %327 = vmatprep.subr.mxu0 0.0
        %328 = vmatpush1.xpose.msra.mxu0 0.0
        %329 = vmatprep.subr.mxu0 0.0
        %330 = vmatpush1.xpose.msra.mxu0 0.0
        %331 = vmatprep.subr.mxu0 0.0
        %332 = vmatpush1.xpose.msra.mxu0 0.0
        %333 = vmatprep.subr.mxu0 0.0
        %334 = vmatpush1.xpose.msra.mxu0 0.0
        %335 = vmatprep.subr.mxu0 0.0
        %336 = vmatpush1.xpose.msra.mxu0 0.0
        %337 = vmatprep.subr.mxu0 0.0
        %338 = vmatpush1.xpose.msra.mxu0 0.0
        %339 = vmatprep.subr.mxu0 0.0
        %340 = vmatpush1.xpose.msra.mxu0 0.0
        %341 = vmatprep.subr.mxu0 0.0
        %342 = vmatpush1.xpose.msra.mxu0 0.0
        %343 = vmatprep.mubr.f32.mxu0 0.0
        %344 = vmatmul.mubr.f32.gmra.mrb[0].mxu0 %v265
        %v345 = vpop.f32.mrb[0].mxu0
        %v346 = vadd.f32 %v261, %v345
        %v347 = vpop.f32.mrb[0].mxu0
        %348 = vdwg.mxu0
        %349 = vst.msk [vmem:[%s246] sm:$0xff] %vm263, %v346
        %s350 = sand.u32 %s132, 1
        %s351 = scalar_lea.sflag [#allocation4], %s350
        %s352 = sand.u32 %s132, 1
        %s353 = smul.addr %s352, 8
        %s354 = scalar_lea.vmem [#allocation7], %s353
        // Predicated region
        $region41: #{tpu_custom_call.1} parent=31 // pred_check
          %p355 = pneg %p142
        $region42: #{tpu_custom_call.1} parent=31 // pred_check_branch
          %357 = sbr.rel (%p355) target = $region44
        $region43: #{tpu_custom_call.1} parent=31 // pred_region
          %s359 = ssub.s32 128, 128
          %360 = vsyncadd %s351, %s359
          %s361 = sadd.s32 %s27, %s26
          %s362 = smul.addr %s361, 128
          %s363 = scalar_lea.hbm %s3, %s362
          %s365 = sshll.u32 %s354, 4
          %s366 = int_to_ptr.vmem [resolvable:$true] %s365
          %368 = dma.vmem_to_hbm [thread:$0]  %s366, 128, %s363, %s351
        $region44: #{tpu_custom_call.1} parent=31 // pred_fallthru
          _
      $region32: #{tpu_custom_call.1} parent=5 // pred_fallthru
        _
      %p369 = scmp.le.s32.totalorder 2, %s16
      // Predicated region
      $region45: #{tpu_custom_call.1} parent=5 // pred_check
        %p370 = pneg %p369
      $region46: #{tpu_custom_call.1} parent=5 // pred_check_branch
        %372 = sbr.rel (%p370) target = $region48
      $region47: #{tpu_custom_call.1} parent=5 // pred_region
        %s373 = ssub.s32 %s16, 2
        // Predicated region
        $region49: #{tpu_custom_call.1} parent=47 // pred_check
          %p374 = pneg %p148
        $region50: #{tpu_custom_call.1} parent=47 // pred_check_branch
          %376 = sbr.rel (%p374) target = $region52
        $region51: #{tpu_custom_call.1} parent=47 // pred_region
          %s377 = sand.u32 %s133, 1
          %s378 = scalar_lea.sflag [#allocation4], %s377
          %s379 = sand.u32 %s133, 1
          %s380 = smul.addr %s379, 8
          %s381 = scalar_lea.vmem [#allocation7], %s380
          %382 = dma.done %s378, 128
        $region52: #{tpu_custom_call.1} parent=47 // pred_fallthru
          _
      $region48: #{tpu_custom_call.1} parent=5 // pred_fallthru
        _
    $region6: #{tpu_custom_call.1} parent=1 // loop_footer
      %s20 = sadd.s32 1, %s16
    $region7: #{tpu_custom_call.1} parent=1 // loop_footer_branch
      %15 = sbr.rel target = $region3
    $region8: #{tpu_custom_call.1} parent=1 // loop_exit
      _
    %383 = vsyncpa [#allocation3], 1
    %s384 = scalar_lea.sflag [#allocation3], 1
    %385 = vsyncpa %s384, 1
    %386 = vsyncpa [#allocation6], 1
    %387 = vsyncpa [#allocation4], 1
    %s388 = scalar_lea.sflag [#allocation4], 1
    %389 = vsyncpa %s388, 1

</llo_original>
